<compile_context>
chip_gen: v5e
topology: v5e:2x2
jax: 0.10.0
libtpu: 0.0.40
codegen_flags: <defaults>
</compile_context>

<pallas_src>
import functools

import jax
import jax.numpy as jnp
from jax.experimental import pallas as pl
from jax.experimental.pallas import tpu as pltpu


def _round_up(v, m):
    return ((v + m - 1) // m) * m


# ---------------------------------------------------------------------------
# Pallas kernel: fused (all segments) matmul + bias + optional ReLU
# ---------------------------------------------------------------------------
def _seg_linear_kernel(x_ref, w_ref, b_ref, o_ref, *, apply_relu):
    # x_ref: (tm, K) native dtype, w_ref: (K, tn) bf16, b_ref: (1, tn) f32, o_ref: (tm, tn)
    # Cast the activation tile to bf16 on the VPU (avoids a separate XLA astype HBM pass).
    x_bf = x_ref[...].astype(jnp.bfloat16)
    acc = jnp.dot(x_bf, w_ref[...], preferred_element_type=jnp.float32)
    acc = acc + b_ref[...]
    if apply_relu:
        acc = jnp.maximum(acc, 0.0)
    o_ref[...] = acc.astype(o_ref.dtype)


# ---------------------------------------------------------------------------
# One-time parameter preparation (outside the per-call forward)
# ---------------------------------------------------------------------------
def fuse_segment_params(seg_weights, seg_biases, lane_multiple=128):
    """seg_weights: list of (segment_size, input_size) PyTorch-layout weights.

    nn.Linear computes y = x @ W.T + b, so segments concatenate along the output columns.
    The fused width is zero-padded up to a multiple of 128 so the kernel's output stores
    stay lane-dense (no vst.msk partial stores); casts to bf16 (weights) / f32 (bias) are
    paid once here, not per forward.
    Returns (w_fused (K, N_pad) bf16, b_fused (1, N_pad) f32, n_valid).
    """
    w_fused = jnp.concatenate([jnp.asarray(w).T for w in seg_weights], axis=1)
    b_fused = jnp.concatenate([jnp.asarray(b) for b in seg_biases], axis=0)
    n_valid = w_fused.shape[1]
    n_pad = _round_up(n_valid, lane_multiple)
    if n_pad != n_valid:
        w_fused = jnp.pad(w_fused, ((0, 0), (0, n_pad - n_valid)))
        b_fused = jnp.pad(b_fused, (0, n_pad - n_valid))
    w_fused = w_fused.astype(jnp.bfloat16)
    b_fused = b_fused.astype(jnp.float32).reshape(1, n_pad)
    return w_fused, b_fused, n_valid


# ---------------------------------------------------------------------------
# Forward wrapper
# ---------------------------------------------------------------------------
def segmented_linear(x, w_fused, b_fused, n_valid=None, *, output=False,
                     out_dtype=jnp.bfloat16, tm_max=512, tn_max=512):
    """Forward of SegmentedLinear with all segments fused into one tiled MXU matmul."""
    M, K = x.shape
    K2, N = w_fused.shape
    assert K == K2
    assert N % 128 == 0, "fuse_segment_params() pads the fused width to a multiple of 128"
    if n_valid is None:
        n_valid = N

    x_bytes = jnp.dtype(x.dtype).itemsize
    w_bytes = jnp.dtype(w_fused.dtype).itemsize
    o_bytes = jnp.dtype(out_dtype).itemsize

    # MXU / lane aligned tiles: tm multiple of 8 (sublanes), tn multiple of 128 (lanes).
    tm = min(tm_max, _round_up(M, 8))
    tn = min(tn_max, N)

    def tile_bytes(tm_, tn_):
        # Conservative: every operand/output block double-buffered.
        return 2 * (tm_ * K * x_bytes + K * tn_ * w_bytes + tn_ * 4 + tm_ * tn_ * o_bytes)

    # Budget sized for the smallest VMEM (v7x: 64 MiB physical per TC) with headroom.
    vmem_target = 28 << 20
    while tile_bytes(tm, tn) > vmem_target and tn > 128:
        tn = max(128, (tn // 2) // 128 * 128)
    while tile_bytes(tm, tn) > vmem_target and tm > 8:
        tm = max(8, (tm // 2) // 8 * 8)

    grid = (pl.cdiv(M, tm), pl.cdiv(N, tn))
    vmem_limit = int(min(max(tile_bytes(tm, tn) + (8 << 20), 32 << 20), 48 << 20))

    kernel = functools.partial(_seg_linear_kernel, apply_relu=not output)
    out = pl.pallas_call(
        kernel,
        out_shape=jax.ShapeDtypeStruct((M, N), out_dtype),
        grid=grid,
        in_specs=[
            pl.BlockSpec((tm, K), lambda i, j: (i, 0)),   # activation tile (pipelined over M)
            pl.BlockSpec((K, tn), lambda i, j: (0, j)),   # weight column tile (pipelined over N)
            pl.BlockSpec((1, tn), lambda i, j: (0, j)),   # bias tile
        ],
        out_specs=pl.BlockSpec((tm, tn), lambda i, j: (i, j)),
        compiler_params=pltpu.CompilerParams(
            dimension_semantics=("parallel", "parallel"),  # megacore on v7x; no-op on v5e/v6e
            vmem_limit_bytes=vmem_limit,
        ),
        cost_estimate=pl.CostEstimate(
            flops=2 * M * K * N,
            transcendentals=0,
            bytes_accessed=M * K * x_bytes + K * N * w_bytes + N * 4 + M * N * o_bytes,
        ),
    )(x, w_fused, b_fused)

    if n_valid != N:
        # Only needed when the fused width is not a multiple of 128 (one cheap slice).
        out = out[:, :n_valid]
    return out


# TODO(synk): torch.jit.fork/wait async per-segment dispatch has no kernel equivalent — the
# segments are fused into a single matmul (identical math).  freeze()/unfreeze() only toggle
# requires_grad for training and are not part of the forward pass.


# ---------------------------------------------------------------------------
# Demo / self-test
# ---------------------------------------------------------------------------
def _make_params(key, input_size, segment_size, num_segments):
    bound = 1.0 / float(input_size) ** 0.5
    seg_weights, seg_biases = [], []
    for _ in range(num_segments):
        key, kw, kb = jax.random.split(key, 3)
        seg_weights.append(
            jax.random.uniform(kw, (segment_size, input_size), jnp.float32, -bound, bound)
        )
        seg_biases.append(
            jax.random.uniform(kb, (segment_size,), jnp.float32, -bound, bound)
        )
    return key, seg_weights, seg_biases


def _reference(x, seg_weights, seg_biases, output):
    ref = jnp.concatenate([x @ w.T + b for w, b in zip(seg_weights, seg_biases)], axis=1)
    if not output:
        ref = jnp.maximum(ref, 0.0)
    return ref


if __name__ == "__main__":
    key = jax.random.PRNGKey(0)

    # --- Test 1: hidden layer (ReLU), lane-dense fused width, batch multiple of 8 ---------
    batch, input_size, segment_size, num_segments = 8, 32, 32, 4
    key, kx = jax.random.split(key)
    x = jax.random.normal(kx, (batch, input_size), dtype=jnp.float32)
    key, seg_w, seg_b = _make_params(key, input_size, segment_size, num_segments)
    w_fused, b_fused, n_valid = fuse_segment_params(seg_w, seg_b)

    out = segmented_linear(x, w_fused, b_fused, n_valid, output=False)
    out = jax.block_until_ready(out)
    ref = _reference(x, seg_w, seg_b, output=False)
    assert out.shape == (batch, num_segments * segment_size)
    assert bool(jnp.all(jnp.isfinite(out)))
    # Loose tolerance covers bf16 MXU operands and the bf16 output writeback.
    assert bool(jnp.allclose(out.astype(jnp.float32), ref, atol=5e-2, rtol=5e-2))

    # --- Test 2: output layer (no ReLU), ragged batch + non-lane-aligned fused width -------
    batch2, seg_size2, num_seg2 = 10, 24, 3   # fused width 72 -> padded to 128 internally
    key, kx2 = jax.random.split(key)
    x2 = jax.random.normal(kx2, (batch2, input_size), dtype=jnp.float32)
    key, seg_w2, seg_b2 = _make_params(key, input_size, seg_size2, num_seg2)
    w_fused2, b_fused2, n_valid2 = fuse_segment_params(seg_w2, seg_b2)

    out2 = segmented_linear(x2, w_fused2, b_fused2, n_valid2, output=True)
    out2 = jax.block_until_ready(out2)
    ref2 = _reference(x2, seg_w2, seg_b2, output=True)
    assert out2.shape == (batch2, num_seg2 * seg_size2)
    assert bool(jnp.all(jnp.isfinite(out2)))
    assert bool(jnp.allclose(out2.astype(jnp.float32), ref2, atol=5e-2, rtol=5e-2))

    print("KERNEL_OK")
</pallas_src>

<mosaic_0001>
module attributes {stable_mosaic.version = 11 : i64} {
  func.func @_seg_linear_kernel(%arg0: i32, %arg1: i32, %arg2: memref<8x32xf32, #tpu.memory_space<vmem>>, %arg3: memref<32x128xbf16, #tpu.memory_space<vmem>>, %arg4: memref<1x128xf32, #tpu.memory_space<vmem>>, %arg5: memref<8x128xbf16, #tpu.memory_space<vmem>>) attributes {dimension_semantics = [#tpu.dimension_semantics<parallel>, #tpu.dimension_semantics<parallel>], iteration_bounds = array<i64: 1, 1>, scalar_prefetch = 0 : i64, scratch_operands = 0 : i64, tpu.core_type = #tpu.core_type<tc>, window_params = [{transform_indices = @transform_0, window_bounds = array<i64: 8, 32>}, {transform_indices = @transform_1, window_bounds = array<i64: 32, 128>}, {transform_indices = @transform_2, window_bounds = array<i64: 1, 128>}, {transform_indices = @transform_3, window_bounds = array<i64: 8, 128>}]} {
    %c0 = arith.constant 0 : index
    %c0_0 = arith.constant 0 : index
    %0 = vector.load %arg2[%c0, %c0_0] : memref<8x32xf32, #tpu.memory_space<vmem>>, vector<8x32xf32>
    %1 = arith.truncf %0 : vector<8x32xf32> to vector<8x32xbf16>
    %c0_1 = arith.constant 0 : index
    %c0_2 = arith.constant 0 : index
    %2 = vector.load %arg3[%c0_1, %c0_2] : memref<32x128xbf16, #tpu.memory_space<vmem>>, vector<32x128xbf16>
    %cst = arith.constant dense<0.000000e+00> : vector<8x128xf32>
    %3 = tpu.matmul %1, %2, %cst {dimension_numbers = #tpu.dot_dimension_numbers<[1], [0], [0], [1], [0, 0, 1, 1], [], []>} : vector<8x32xbf16>, vector<32x128xbf16>, vector<8x128xf32> -> vector<8x128xf32>
    %c0_3 = arith.constant 0 : index
    %c0_4 = arith.constant 0 : index
    %4 = vector.load %arg4[%c0_3, %c0_4] : memref<1x128xf32, #tpu.memory_space<vmem>>, vector<1x128xf32>
    %5 = vector.broadcast %4 : vector<1x128xf32> to vector<8x128xf32>
    %6 = arith.addf %3, %5 : vector<8x128xf32>
    %cst_5 = arith.constant 0.000000e+00 : f32
    %7 = vector.broadcast %cst_5 : f32 to vector<8x128xf32>
    %8 = arith.maximumf %6, %7 : vector<8x128xf32>
    %9 = arith.truncf %8 : vector<8x128xf32> to vector<8x128xbf16>
    %c0_6 = arith.constant 0 : index
    %c0_7 = arith.constant 0 : index
    %10 = vector.load %arg5[%c0_6, %c0_7] : memref<8x128xbf16, #tpu.memory_space<vmem>>, vector<8x128xbf16>
    tpu.vector_store %arg5[%c0_6, %c0_7], %9 {strides = array<i32>} : memref<8x128xbf16, #tpu.memory_space<vmem>>, vector<8x128xbf16>,
    return
  }
  func.func @transform_0(%arg0: i32, %arg1: i32) -> (i32, i32) {
    %c0_i32 = arith.constant 0 : i32
    %c0_i32_0 = arith.constant 0 : i32
    return %arg0, %c0_i32 : i32, i32
  }
  func.func @transform_1(%arg0: i32, %arg1: i32) -> (i32, i32) {
    %c0_i32 = arith.constant 0 : i32
    %c0_i32_0 = arith.constant 0 : i32
    return %c0_i32, %arg1 : i32, i32
  }
  func.func @transform_2(%arg0: i32, %arg1: i32) -> (i32, i32) {
    %c0_i32 = arith.constant 0 : i32
    %c0_i32_0 = arith.constant 0 : i32
    return %c0_i32, %arg1 : i32, i32
  }
  func.func @transform_3(%arg0: i32, %arg1: i32) -> (i32, i32) {
    %c0_i32 = arith.constant 0 : i32
    return %arg0, %arg1 : i32, i32
  }
}

</mosaic_0001>

<llo_original>
// kernel: tpu_custom_call.1
$region0: #{tpu_custom_call.1}
  #allocation0 [shape = 'u32[]', space=smem, size = 0x4, offset = 0x4, fixed_abs, tag = 'smem constant byte address 0x4 - core index']
  #allocation1 [shape = 'u32[72,128]{1,0:T(1,128)}', space=vmem, size = 0x9000, scoped, tag = 'internal scratch']
  %s0 = inlined_call_operand.hbm [shape: f32[8,32], index: 0, kind: input, shape index: {}]
  %s1 = inlined_call_operand.hbm [shape: bf16[32,128], index: 1, kind: input, shape index: {}]
  %s2 = inlined_call_operand.vmem [shape: f32[1,128], index: 2, kind: input, shape index: {}]
  %s3 = inlined_call_operand.hbm [shape: bf16[8,128], index: 3, kind: output, shape index: {}]
  %s4 = sld [smem:[#allocation0]]
  $region30: #{tpu_custom_call.1} parent=0
    _
  %s6 = ssub.s32 1, %s4
  %s7 = scalar_select 0, %s6, %s4
  $region1: #{tpu_custom_call.1} parent=0
    #allocation2 [shape = 'u8[4096]{0}', space=vmem, size = 0x1000, scoped, tag = 'input window, operand 0, single buffered']
    #allocation3 [shape = 's32[1]{0}', space=sflag, size = 0x4, scoped, tag = 'scoped memory for tpu_custom_call.1']
    #allocation4 [shape = 's32[1]{0}', space=sflag, size = 0x4, scoped, tag = 'scoped memory for tpu_custom_call.1']
    #allocation5 [shape = 'u8[8192]{0}', space=vmem, size = 0x2000, scoped, tag = 'input window, operand 1, single buffered']
    #allocation6 [shape = 's32[1]{0}', space=sflag, size = 0x4, scoped, tag = 'scoped memory for tpu_custom_call.1']
    #allocation7 [shape = 'u8[2048]{0}', space=vmem, size = 0x800, scoped, tag = 'output window, operand 0, single buffered']
    %8 = vsyncpa [#allocation3], 0
    %9 = vsyncpa [#allocation6], 0
    %10 = vsyncpa [#allocation4], 0
    // Predicated region
    $region2: #{tpu_custom_call.1} parent=1 // pred_check
      _
    $region3: #{tpu_custom_call.1} parent=1 // pred_check_branch
      %12 = sbr.rel (0) target = $region5
    $region4: #{tpu_custom_call.1} parent=1 // pred_region
      %14 = vsyncadd [#allocation3], 0
      %s16 = sshll.u32 %s0, 4
      %s17 = int_to_ptr.hbm [resolvable:$true] %s16
      %s18 = sshll.u32 [#allocation2], 4
      %s19 = int_to_ptr.vmem [resolvable:$true] %s18
      %21 = dma.hbm_to_vmem [thread:$0]  %s17, 128, %s19, [#allocation3]
    $region5: #{tpu_custom_call.1} parent=1 // pred_fallthru
      _
    // Predicated region
    $region6: #{tpu_custom_call.1} parent=1 // pred_check
      _
    $region7: #{tpu_custom_call.1} parent=1 // pred_check_branch
      %23 = sbr.rel (0) target = $region9
    $region8: #{tpu_custom_call.1} parent=1 // pred_region
      %25 = vsyncadd [#allocation6], 0
      %s26 = sshll.u32 %s1, 4
      %s27 = int_to_ptr.hbm [resolvable:$true] %s26
      %s28 = sshll.u32 [#allocation5], 4
      %s29 = int_to_ptr.vmem [resolvable:$true] %s28
      %34 = dma.hbm_to_vmem [thread:$0]  %s27, 256, %s29, [#allocation6], 64, 64, 4
    $region9: #{tpu_custom_call.1} parent=1 // pred_fallthru
      _
    // Predicated region
    $region10: #{tpu_custom_call.1} parent=1 // pred_check
      _
    $region11: #{tpu_custom_call.1} parent=1 // pred_check_branch
      %36 = sbr.rel (0) target = $region13
    $region12: #{tpu_custom_call.1} parent=1 // pred_region
      _
    $region13: #{tpu_custom_call.1} parent=1 // pred_fallthru
      _
    // Predicated region
    $region14: #{tpu_custom_call.1} parent=1 // pred_check
      _
    $region15: #{tpu_custom_call.1} parent=1 // pred_check_branch
      %38 = sbr.rel (0) target = $region17
    $region16: #{tpu_custom_call.1} parent=1 // pred_region
      %40 = dma.done [#allocation3], 128
    $region17: #{tpu_custom_call.1} parent=1 // pred_fallthru
      _
    // Predicated region
    $region18: #{tpu_custom_call.1} parent=1 // pred_check
      _
    $region19: #{tpu_custom_call.1} parent=1 // pred_check_branch
      %42 = sbr.rel (0) target = $region21
    $region20: #{tpu_custom_call.1} parent=1 // pred_region
      %44 = dma.done [#allocation6], 256
    $region21: #{tpu_custom_call.1} parent=1 // pred_fallthru
      _
    %v46 = vld [vmem:[#allocation2] sm:$0xff]
    %v47 = vpack.c.bf16 %v46, %v46
    %v48 = vld [vmem:[#allocation5] sm:$0xf]
    %v49 = vld [vmem:[#allocation5 + $0x4] sm:$0xf]
    %v50 = vld [vmem:[#allocation5 + $0x8] sm:$0xf]
    %v51 = vld [vmem:[#allocation5 + $0xc] sm:$0xf]
    %v52 = vld [vmem:[%s2] sm:$0x1]
    %v54 = vperm.slane %v52, 0
    %v60 = vunpack.c.l.b16 %v48
    %v61 = vunpack.c.l.b16 %v49
    %v62 = vunpack.c.l.b16 %v50
    %v63 = vunpack.c.l.b16 %v51
    %v64 = vpack.c.b16 %v61, %v60
    %v65 = vpack.c.b16 %v63, %v62
    %vm68 = vcmask 261120
    %v70 = vsel %vm68, %v47, 0
    %72 = vmatpush.bf16.msra.mxu0 0
    %73 = vmatpush.bf16.msra.mxu0 0
    %74 = vmatpush.bf16.msra.mxu0 0
    %75 = vmatpush.bf16.msra.mxu0 0
    %76 = vmatpush.bf16.msra.mxu0 0
    %77 = vmatpush.bf16.msra.mxu0 0
    %78 = vmatpush.bf16.msra.mxu0 %v65
    %79 = vmatpush.bf16.msra.mxu0 %v64
    %80 = vmatmul.bf16.gmra.mxu0 %v70
    %v81 = vpop.f32.mrf.mxu0
    %v82 = vadd.f32 %v54, %v81
    %v83 = vpop.f32.mrf.mxu0
    %84 = vdwg.mxu0
    %v85 = vmax.f32 %v82, 0.0
    %v86 = vpack.c.bf16 %v85, %v85
    %87 = vst [vmem:[#allocation7] sm:$0xf] %v86
    // Predicated region
    $region22: #{tpu_custom_call.1} parent=1 // pred_check
      _
    $region23: #{tpu_custom_call.1} parent=1 // pred_check_branch
      %89 = sbr.rel (0) target = $region25
    $region24: #{tpu_custom_call.1} parent=1 // pred_region
      %91 = vsyncadd [#allocation4], 0
      %s93 = sshll.u32 [#allocation7], 4
      %s94 = int_to_ptr.vmem [resolvable:$true] %s93
      %s95 = sshll.u32 %s3, 4
      %s96 = int_to_ptr.hbm [resolvable:$true] %s95
      %98 = dma.vmem_to_hbm [thread:$0]  %s94, 64, %s96, [#allocation4]
    $region25: #{tpu_custom_call.1} parent=1 // pred_fallthru
      _
    // Predicated region
    $region26: #{tpu_custom_call.1} parent=1 // pred_check
      _
    $region27: #{tpu_custom_call.1} parent=1 // pred_check_branch
      %100 = sbr.rel (0) target = $region29
    $region28: #{tpu_custom_call.1} parent=1 // pred_region
      %102 = dma.done [#allocation4], 64
    $region29: #{tpu_custom_call.1} parent=1 // pred_fallthru
      _
    %103 = vsyncpa [#allocation3], 1
    %104 = vsyncpa [#allocation6], 1
    %105 = vsyncpa [#allocation4], 1

</llo_original>
